<compile_context>
chip_gen: v7x
topology: tpu7x:2x2x1
jax: 0.10.0
libtpu: 0.0.40
codegen_flags: <defaults>
</compile_context>

<pallas_src>
import functools

import jax
import jax.numpy as jnp
import numpy as np
from jax import lax
from jax.experimental import pallas as pl
from jax.experimental.pallas import tpu as pltpu


def _round_up(n, m):
    return ((n + m - 1) // m) * m


def _dice_stats_kernel(x_ref, t_ref, o_ref, acc_in, acc_tg, acc_pr, *,
                       groups_full, groups_last, tail, ragged):
    """Per-sample partial sums over the flattened feature axis.

    x_ref, t_ref : (Bt, Kt) input tiles (native dtype; upcast here)
    o_ref        : (Bt, 128) f32; lane0=sum(x), lane1=sum(t), lane2=sum(x*t)
    acc_*        : (Bt, 128) f32 VMEM lane-wise accumulators (persist across k)
    """
    k = pl.program_id(1)
    nk = pl.num_programs(1)

    @pl.when(k == 0)
    def _():
        acc_in[...] = jnp.zeros_like(acc_in)
        acc_tg[...] = jnp.zeros_like(acc_tg)
        acc_pr[...] = jnp.zeros_like(acc_pr)

    def accumulate(n_groups, tail_lanes):
        si = acc_in[...]
        st = acc_tg[...]
        sp = acc_pr[...]

        def body(g, carry):
            si, st, sp = carry
            off = pl.multiple_of(g * 128, 128)
            xg = x_ref[:, pl.ds(off, 128)].astype(jnp.float32)
            tg = t_ref[:, pl.ds(off, 128)].astype(jnp.float32)
            return si + xg, st + tg, sp + xg * tg

        if n_groups > 0:
            si, st, sp = lax.fori_loop(0, n_groups, body, (si, st, sp),
                                       unroll=min(8, n_groups))

        if tail_lanes:
            off = n_groups * 128                      # static
            lane = lax.broadcasted_iota(jnp.int32, (acc_in.shape[0], 128), 1)
            valid = lane < tail_lanes
            # where() (not multiply) so OOB garbage (possibly NaN) never leaks.
            xg = jnp.where(valid, x_ref[:, off:off + 128].astype(jnp.float32),
                           jnp.float32(0.0))
            tg = jnp.where(valid, t_ref[:, off:off + 128].astype(jnp.float32),
                           jnp.float32(0.0))
            si, st, sp = si + xg, st + tg, sp + xg * tg

        acc_in[...] = si
        acc_tg[...] = st
        acc_pr[...] = sp

    if not ragged:
        accumulate(groups_full, 0)
    else:
        @pl.when(k < nk - 1)
        def _():
            accumulate(groups_full, 0)

        @pl.when(k == nk - 1)
        def _():
            accumulate(groups_last, tail)

    # Cross-lane (XLU) reduction + lane-dense output store, once per batch block.
    @pl.when(k == nk - 1)
    def _():
        s_in = jnp.sum(acc_in[...], axis=1, keepdims=True)   # (Bt, 1)
        s_tg = jnp.sum(acc_tg[...], axis=1, keepdims=True)
        s_pr = jnp.sum(acc_pr[...], axis=1, keepdims=True)
        lane = lax.broadcasted_iota(jnp.int32, o_ref.shape, 1)
        o_ref[...] = jnp.where(lane == 0, s_in,
                     jnp.where(lane == 1, s_tg,
                     jnp.where(lane == 2, s_pr, jnp.float32(0.0))))


def scaled_dice_loss(inputs, targets, smooth=1.0, threshold_zero_loss=10.0):
    """JAX/Pallas equivalent of ScaledDiceLoss.forward. Returns an f32 scalar."""
    assert inputs.shape == targets.shape and inputs.ndim >= 2
    B = inputs.shape[0]
    K = int(np.prod(inputs.shape[1:]))

    # Lane-dense flattened views; native dtypes (no wrapper copies, no padding).
    x2 = inputs.reshape(B, K)
    t2 = targets.reshape(B, K)
    itemsize = max(np.dtype(x2.dtype).itemsize, np.dtype(t2.dtype).itemsize)

    # ---- tile / grid selection ----------------------------------------------
    # Batch block: full batch if tiny, else a multiple of 8, capped at 32 rows
    # (accumulator vreg pressure) and so that B//Bt >= 2 when B >= 16 (v7x TCs).
    if B <= 8:
        Bt = B
    else:
        Bt = 8
        while Bt * 2 <= 32 and -(-B // (Bt * 2)) >= 2:
            Bt *= 2

    # Feature chunk: fixed large lane-aligned width, budgeted so the two
    # double-buffered input tiles stay well under the VMEM limit.
    vmem_budget = 24 * 1024 * 1024
    Kt = 32768
    while Kt > 512 and 4 * Bt * Kt * itemsize > vmem_budget:
        Kt //= 2
    Kt = min(Kt, _round_up(K, 128))

    n_b = -(-B // Bt)
    n_k = -(-K // Kt)
    grid = (n_b, n_k)

    groups_full = Kt // 128
    rem = K - (n_k - 1) * Kt          # valid lanes in the last chunk (static)
    groups_last = rem // 128
    tail = rem % 128
    ragged = (K % Kt) != 0

    kernel = functools.partial(
        _dice_stats_kernel,
        groups_full=groups_full, groups_last=groups_last,
        tail=tail, ragged=ragged)

    bytes_accessed = (x2.size * x2.dtype.itemsize
                      + t2.size * t2.dtype.itemsize
                      + B * 128 * 4)

    stats = pl.pallas_call(
        kernel,
        out_shape=jax.ShapeDtypeStruct((B, 128), jnp.float32),
        grid_spec=pltpu.PrefetchScalarGridSpec(
            num_scalar_prefetch=0,
            grid=grid,
            in_specs=[
                pl.BlockSpec((Bt, Kt), lambda i, k: (i, k)),
                pl.BlockSpec((Bt, Kt), lambda i, k: (i, k)),
            ],
            out_specs=pl.BlockSpec((Bt, 128), lambda i, k: (i, 0)),
            scratch_shapes=[pltpu.VMEM((Bt, 128), jnp.float32)] * 3,
        ),
        compiler_params=pltpu.CompilerParams(
            dimension_semantics=("parallel", "arbitrary"),
            vmem_limit_bytes=48 * 1024 * 1024),
        cost_estimate=pl.CostEstimate(
            flops=3 * B * K, transcendentals=0,
            bytes_accessed=bytes_accessed),
    )(x2, t2)

    # ---- final scalar combine (O(B), plain JAX) ------------------------------
    s_in = stats[:, 0]
    s_tg = stats[:, 1]
    s_pr = stats[:, 2]

    T = jnp.float32(threshold_zero_loss)
    smooth = jnp.float32(smooth)

    mask_low = jnp.logical_and(s_in <= T, s_tg <= T)
    count_low = jnp.sum(mask_low.astype(jnp.float32))
    count_norm = jnp.float32(B) - count_low

    # low branch: 1 / 2**(2.75*T - s_in - s_tg) == 2**(s_in + s_tg - 2.75*T)
    low_exp = jnp.where(mask_low, s_in + s_tg, jnp.float32(0.0)) - jnp.float32(2.75) * T
    low_vals = jnp.exp2(low_exp)
    low_mean = jnp.where(
        count_low > 0,
        jnp.sum(jnp.where(mask_low, low_vals, 0.0)) / jnp.maximum(count_low, 1.0),
        jnp.float32(0.0))

    # normal (dice) branch over the union of non-low samples
    s_in_n = jnp.sum(jnp.where(mask_low, 0.0, s_in))
    s_tg_n = jnp.sum(jnp.where(mask_low, 0.0, s_tg))
    s_pr_n = jnp.sum(jnp.where(mask_low, 0.0, s_pr))
    # Guard log argument in the dead branch only (grad safety); forward identical.
    log_arg = jnp.where(count_norm > 0,
                        (s_in_n + s_tg_n) / jnp.maximum(count_norm, 1.0),
                        jnp.float32(1.0))
    scaling = jnp.log(log_arg)
    dice = (2.0 * s_pr_n + smooth) / (s_in_n + s_tg_n + smooth)
    normal = jnp.where(count_norm > 0, scaling * (1.0 - dice), jnp.float32(0.0))

    return (count_norm / B) * normal + (count_low / B) * low_mean


def _reference_scaled_dice_loss(inputs, targets, smooth=1.0, T=10.0):
    """Pure numpy reference replicating the PyTorch semantics (verification)."""
    x = np.asarray(inputs, np.float64)
    t = np.asarray(targets, np.float64)
    s_in = x.sum(axis=tuple(range(1, x.ndim)))
    s_tg = t.sum(axis=tuple(range(1, t.ndim)))
    mask = (s_in <= T) & (s_tg <= T)

    if mask.sum() > 0:
        low = 1.0 / 2.0 ** (2.75 * T - s_in[mask] - s_tg[mask])
        low_mean = low.mean()
    else:
        low_mean = 0.0

    nm = ~mask
    if nm.sum() > 0:
        xi, ti = x[nm], t[nm]
        scaling = np.log((xi.sum() + ti.sum()) / xi.shape[0])
        inter = (xi * ti).sum()
        dice = (2.0 * inter + smooth) / (xi.sum() + ti.sum() + smooth)
        normal = scaling * (1.0 - dice)
    else:
        normal = 0.0

    return nm.mean() * normal + mask.mean() * low_mean


if __name__ == "__main__":
    key = jax.random.PRNGKey(0)
    k1, k2 = jax.random.split(key)

    B, C, H, W = 2, 4, 16, 16
    inputs = jax.random.uniform(k1, (B, C, H, W), dtype=jnp.float32)
    targets = (jax.random.uniform(k2, (B, C, H, W)) > 0.5).astype(jnp.float32)

    # Sample 0 exercises the low-loss branch (per-sample sums <= threshold),
    # sample 1 the normal dice branch.
    scale = jnp.array([1e-3, 1.0], dtype=jnp.float32).reshape(B, 1, 1, 1)
    inputs = inputs * scale
    targets = targets * scale

    loss_fn = jax.jit(functools.partial(scaled_dice_loss,
                                        smooth=1.0, threshold_zero_loss=10.0))
    loss = jax.block_until_ready(loss_fn(inputs, targets))

    ref = _reference_scaled_dice_loss(np.asarray(inputs), np.asarray(targets),
                                      smooth=1.0, T=10.0)
    np.testing.assert_allclose(np.asarray(loss, np.float64), ref,
                               rtol=1e-4, atol=1e-5)

    print("KERNEL_OK")
</pallas_src>

<mosaic_0001>
module attributes {stable_mosaic.version = 11 : i64} {
  func.func @_dice_stats_kernel(%arg0: i32, %arg1: i32, %arg2: memref<2x1024xf32, #tpu.memory_space<vmem>>, %arg3: memref<2x1024xf32, #tpu.memory_space<vmem>>, %arg4: memref<2x128xf32, #tpu.memory_space<vmem>>, %arg5: memref<2x128xf32, #tpu.memory_space<vmem>>, %arg6: memref<2x128xf32, #tpu.memory_space<vmem>>, %arg7: memref<2x128xf32, #tpu.memory_space<vmem>>) attributes {dimension_semantics = [#tpu.dimension_semantics<parallel>, #tpu.dimension_semantics<arbitrary>], iteration_bounds = array<i64: 1, 1>, scalar_prefetch = 0 : i64, scratch_operands = 3 : i64, tpu.core_type = #tpu.core_type<tc>, window_params = [{transform_indices = @transform_0, window_bounds = array<i64: 2, 1024>}, {transform_indices = @transform_1, window_bounds = array<i64: 2, 1024>}, {transform_indices = @transform_2, window_bounds = array<i64: 2, 128>}]} {
    %c0_i32 = arith.constant 0 : i32
    %0 = arith.cmpi eq, %arg1, %c0_i32 : i32
    %1 = arith.extui %0 : i1 to i32
    %c0_i32_0 = arith.constant 0 : i32
    %2 = arith.cmpi ne, %1, %c0_i32_0 : i32
    scf.if %2 {
      %cst = arith.constant 0.000000e+00 : f32
      %92 = vector.broadcast %cst : f32 to vector<2x128xf32>
      %c0_38 = arith.constant 0 : index
      %c0_39 = arith.constant 0 : index
      %93 = vector.load %arg5[%c0_38, %c0_39] : memref<2x128xf32, #tpu.memory_space<vmem>>, vector<2x128xf32>
      tpu.vector_store %arg5[%c0_38, %c0_39], %92 {strides = array<i32>} : memref<2x128xf32, #tpu.memory_space<vmem>>, vector<2x128xf32>,
      %cst_40 = arith.constant 0.000000e+00 : f32
      %94 = vector.broadcast %cst_40 : f32 to vector<2x128xf32>
      %c0_41 = arith.constant 0 : index
      %c0_42 = arith.constant 0 : index
      %95 = vector.load %arg6[%c0_41, %c0_42] : memref<2x128xf32, #tpu.memory_space<vmem>>, vector<2x128xf32>
      tpu.vector_store %arg6[%c0_41, %c0_42], %94 {strides = array<i32>} : memref<2x128xf32, #tpu.memory_space<vmem>>, vector<2x128xf32>,
      %cst_43 = arith.constant 0.000000e+00 : f32
      %96 = vector.broadcast %cst_43 : f32 to vector<2x128xf32>
      %c0_44 = arith.constant 0 : index
      %c0_45 = arith.constant 0 : index
      %97 = vector.load %arg7[%c0_44, %c0_45] : memref<2x128xf32, #tpu.memory_space<vmem>>, vector<2x128xf32>
      tpu.vector_store %arg7[%c0_44, %c0_45], %96 {strides = array<i32>} : memref<2x128xf32, #tpu.memory_space<vmem>>, vector<2x128xf32>,
    } else {
    }
    %c0 = arith.constant 0 : index
    %c0_1 = arith.constant 0 : index
    %3 = vector.load %arg5[%c0, %c0_1] : memref<2x128xf32, #tpu.memory_space<vmem>>, vector<2x128xf32>
    %c0_2 = arith.constant 0 : index
    %c0_3 = arith.constant 0 : index
    %4 = vector.load %arg6[%c0_2, %c0_3] : memref<2x128xf32, #tpu.memory_space<vmem>>, vector<2x128xf32>
    %c0_4 = arith.constant 0 : index
    %c0_5 = arith.constant 0 : index
    %5 = vector.load %arg7[%c0_4, %c0_5] : memref<2x128xf32, #tpu.memory_space<vmem>>, vector<2x128xf32>
    %c0_i32_6 = arith.constant 0 : i32
    %c128_i32 = arith.constant 128 : i32
    %6 = arith.muli %c0_i32_6, %c128_i32 : i32
    %7 = tpu.assume_multiple %6, 128 : i32
    %c0_7 = arith.constant 0 : index
    %8 = arith.index_cast %7 : i32 to index
    %9 = vector.load %arg2[%c0_7, %8] : memref<2x1024xf32, #tpu.memory_space<vmem>>, vector<2x128xf32>
    %c0_8 = arith.constant 0 : index
    %10 = arith.index_cast %7 : i32 to index
    %11 = vector.load %arg3[%c0_8, %10] : memref<2x1024xf32, #tpu.memory_space<vmem>>, vector<2x128xf32>
    %12 = arith.addf %3, %9 : vector<2x128xf32>
    %13 = arith.addf %4, %11 : vector<2x128xf32>
    %14 = arith.mulf %9, %11 : vector<2x128xf32>
    %15 = arith.addf %5, %14 : vector<2x128xf32>
    %c1_i32 = arith.constant 1 : i32
    %c128_i32_9 = arith.constant 128 : i32
    %16 = arith.muli %c1_i32, %c128_i32_9 : i32
    %17 = tpu.assume_multiple %16, 128 : i32
    %c0_10 = arith.constant 0 : index
    %18 = arith.index_cast %17 : i32 to index
    %19 = vector.load %arg2[%c0_10, %18] : memref<2x1024xf32, #tpu.memory_space<vmem>>, vector<2x128xf32>
    %c0_11 = arith.constant 0 : index
    %20 = arith.index_cast %17 : i32 to index
    %21 = vector.load %arg3[%c0_11, %20] : memref<2x1024xf32, #tpu.memory_space<vmem>>, vector<2x128xf32>
    %22 = arith.addf %12, %19 : vector<2x128xf32>
    %23 = arith.addf %13, %21 : vector<2x128xf32>
    %24 = arith.mulf %19, %21 : vector<2x128xf32>
    %25 = arith.addf %15, %24 : vector<2x128xf32>
    %c2_i32 = arith.constant 2 : i32
    %c128_i32_12 = arith.constant 128 : i32
    %26 = arith.muli %c2_i32, %c128_i32_12 : i32
    %27 = tpu.assume_multiple %26, 128 : i32
    %c0_13 = arith.constant 0 : index
    %28 = arith.index_cast %27 : i32 to index
    %29 = vector.load %arg2[%c0_13, %28] : memref<2x1024xf32, #tpu.memory_space<vmem>>, vector<2x128xf32>
    %c0_14 = arith.constant 0 : index
    %30 = arith.index_cast %27 : i32 to index
    %31 = vector.load %arg3[%c0_14, %30] : memref<2x1024xf32, #tpu.memory_space<vmem>>, vector<2x128xf32>
    %32 = arith.addf %22, %29 : vector<2x128xf32>
    %33 = arith.addf %23, %31 : vector<2x128xf32>
    %34 = arith.mulf %29, %31 : vector<2x128xf32>
    %35 = arith.addf %25, %34 : vector<2x128xf32>
    %c3_i32 = arith.constant 3 : i32
    %c128_i32_15 = arith.constant 128 : i32
    %36 = arith.muli %c3_i32, %c128_i32_15 : i32
    %37 = tpu.assume_multiple %36, 128 : i32
    %c0_16 = arith.constant 0 : index
    %38 = arith.index_cast %37 : i32 to index
    %39 = vector.load %arg2[%c0_16, %38] : memref<2x1024xf32, #tpu.memory_space<vmem>>, vector<2x128xf32>
    %c0_17 = arith.constant 0 : index
    %40 = arith.index_cast %37 : i32 to index
    %41 = vector.load %arg3[%c0_17, %40] : memref<2x1024xf32, #tpu.memory_space<vmem>>, vector<2x128xf32>
    %42 = arith.addf %32, %39 : vector<2x128xf32>
    %43 = arith.addf %33, %41 : vector<2x128xf32>
    %44 = arith.mulf %39, %41 : vector<2x128xf32>
    %45 = arith.addf %35, %44 : vector<2x128xf32>
    %c4_i32 = arith.constant 4 : i32
    %c128_i32_18 = arith.constant 128 : i32
    %46 = arith.muli %c4_i32, %c128_i32_18 : i32
    %47 = tpu.assume_multiple %46, 128 : i32
    %c0_19 = arith.constant 0 : index
    %48 = arith.index_cast %47 : i32 to index
    %49 = vector.load %arg2[%c0_19, %48] : memref<2x1024xf32, #tpu.memory_space<vmem>>, vector<2x128xf32>
    %c0_20 = arith.constant 0 : index
    %50 = arith.index_cast %47 : i32 to index
    %51 = vector.load %arg3[%c0_20, %50] : memref<2x1024xf32, #tpu.memory_space<vmem>>, vector<2x128xf32>
    %52 = arith.addf %42, %49 : vector<2x128xf32>
    %53 = arith.addf %43, %51 : vector<2x128xf32>
    %54 = arith.mulf %49, %51 : vector<2x128xf32>
    %55 = arith.addf %45, %54 : vector<2x128xf32>
    %c5_i32 = arith.constant 5 : i32
    %c128_i32_21 = arith.constant 128 : i32
    %56 = arith.muli %c5_i32, %c128_i32_21 : i32
    %57 = tpu.assume_multiple %56, 128 : i32
    %c0_22 = arith.constant 0 : index
    %58 = arith.index_cast %57 : i32 to index
    %59 = vector.load %arg2[%c0_22, %58] : memref<2x1024xf32, #tpu.memory_space<vmem>>, vector<2x128xf32>
    %c0_23 = arith.constant 0 : index
    %60 = arith.index_cast %57 : i32 to index
    %61 = vector.load %arg3[%c0_23, %60] : memref<2x1024xf32, #tpu.memory_space<vmem>>, vector<2x128xf32>
    %62 = arith.addf %52, %59 : vector<2x128xf32>
    %63 = arith.addf %53, %61 : vector<2x128xf32>
    %64 = arith.mulf %59, %61 : vector<2x128xf32>
    %65 = arith.addf %55, %64 : vector<2x128xf32>
    %c6_i32 = arith.constant 6 : i32
    %c128_i32_24 = arith.constant 128 : i32
    %66 = arith.muli %c6_i32, %c128_i32_24 : i32
    %67 = tpu.assume_multiple %66, 128 : i32
    %c0_25 = arith.constant 0 : index
    %68 = arith.index_cast %67 : i32 to index
    %69 = vector.load %arg2[%c0_25, %68] : memref<2x1024xf32, #tpu.memory_space<vmem>>, vector<2x128xf32>
    %c0_26 = arith.constant 0 : index
    %70 = arith.index_cast %67 : i32 to index
    %71 = vector.load %arg3[%c0_26, %70] : memref<2x1024xf32, #tpu.memory_space<vmem>>, vector<2x128xf32>
    %72 = arith.addf %62, %69 : vector<2x128xf32>
    %73 = arith.addf %63, %71 : vector<2x128xf32>
    %74 = arith.mulf %69, %71 : vector<2x128xf32>
    %75 = arith.addf %65, %74 : vector<2x128xf32>
    %c7_i32 = arith.constant 7 : i32
    %c128_i32_27 = arith.constant 128 : i32
    %76 = arith.muli %c7_i32, %c128_i32_27 : i32
    %77 = tpu.assume_multiple %76, 128 : i32
    %c0_28 = arith.constant 0 : index
    %78 = arith.index_cast %77 : i32 to index
    %79 = vector.load %arg2[%c0_28, %78] : memref<2x1024xf32, #tpu.memory_space<vmem>>, vector<2x128xf32>
    %c0_29 = arith.constant 0 : index
    %80 = arith.index_cast %77 : i32 to index
    %81 = vector.load %arg3[%c0_29, %80] : memref<2x1024xf32, #tpu.memory_space<vmem>>, vector<2x128xf32>
    %82 = arith.addf %72, %79 : vector<2x128xf32>
    %83 = arith.addf %73, %81 : vector<2x128xf32>
    %84 = arith.mulf %79, %81 : vector<2x128xf32>
    %85 = arith.addf %75, %84 : vector<2x128xf32>
    %c8_i32 = arith.constant 8 : i32
    %c0_30 = arith.constant 0 : index
    %c0_31 = arith.constant 0 : index
    %86 = vector.load %arg5[%c0_30, %c0_31] : memref<2x128xf32, #tpu.memory_space<vmem>>, vector<2x128xf32>
    tpu.vector_store %arg5[%c0_30, %c0_31], %82 {strides = array<i32>} : memref<2x128xf32, #tpu.memory_space<vmem>>, vector<2x128xf32>,
    %c0_32 = arith.constant 0 : index
    %c0_33 = arith.constant 0 : index
    %87 = vector.load %arg6[%c0_32, %c0_33] : memref<2x128xf32, #tpu.memory_space<vmem>>, vector<2x128xf32>
    tpu.vector_store %arg6[%c0_32, %c0_33], %83 {strides = array<i32>} : memref<2x128xf32, #tpu.memory_space<vmem>>, vector<2x128xf32>,
    %c0_34 = arith.constant 0 : index
    %c0_35 = arith.constant 0 : index
    %88 = vector.load %arg7[%c0_34, %c0_35] : memref<2x128xf32, #tpu.memory_space<vmem>>, vector<2x128xf32>
    tpu.vector_store %arg7[%c0_34, %c0_35], %85 {strides = array<i32>} : memref<2x128xf32, #tpu.memory_space<vmem>>, vector<2x128xf32>,
    %c0_i32_36 = arith.constant 0 : i32
    %89 = arith.cmpi eq, %arg1, %c0_i32_36 : i32
    %90 = arith.extui %89 : i1 to i32
    %c0_i32_37 = arith.constant 0 : i32
    %91 = arith.cmpi ne, %90, %c0_i32_37 : i32
    scf.if %91 {
      %c0_38 = arith.constant 0 : index
      %c0_39 = arith.constant 0 : index
      %92 = vector.load %arg5[%c0_38, %c0_39] : memref<2x128xf32, #tpu.memory_space<vmem>>, vector<2x128xf32>
      %cst = arith.constant dense<0.000000e+00> : vector<2xf32>
      %93 = vector.multi_reduction <add>, %92, %cst [1] : vector<2x128xf32> to vector<2xf32>
      %94 = vector.shape_cast %93 : vector<2xf32> to vector<2x1xf32>
      %c0_40 = arith.constant 0 : index
      %c0_41 = arith.constant 0 : index
      %95 = vector.load %arg6[%c0_40, %c0_41] : memref<2x128xf32, #tpu.memory_space<vmem>>, vector<2x128xf32>
      %cst_42 = arith.constant dense<0.000000e+00> : vector<2xf32>
      %96 = vector.multi_reduction <add>, %95, %cst_42 [1] : vector<2x128xf32> to vector<2xf32>
      %97 = vector.shape_cast %96 : vector<2xf32> to vector<2x1xf32>
      %c0_43 = arith.constant 0 : index
      %c0_44 = arith.constant 0 : index
      %98 = vector.load %arg7[%c0_43, %c0_44] : memref<2x128xf32, #tpu.memory_space<vmem>>, vector<2x128xf32>
      %cst_45 = arith.constant dense<0.000000e+00> : vector<2xf32>
      %99 = vector.multi_reduction <add>, %98, %cst_45 [1] : vector<2x128xf32> to vector<2xf32>
      %100 = vector.shape_cast %99 : vector<2xf32> to vector<2x1xf32>
      %101 = tpu.iota {dimensions = array<i32: 1>} : vector<2x128xi32>
      %c0_i32_46 = arith.constant 0 : i32
      %102 = vector.broadcast %c0_i32_46 : i32 to vector<2x128xi32>
      %103 = arith.cmpi eq, %101, %102 : vector<2x128xi32>
      %c1_i32_47 = arith.constant 1 : i32
      %104 = vector.broadcast %c1_i32_47 : i32 to vector<2x128xi32>
      %105 = arith.cmpi eq, %101, %104 : vector<2x128xi32>
      %c2_i32_48 = arith.constant 2 : i32
      %106 = vector.broadcast %c2_i32_48 : i32 to vector<2x128xi32>
      %107 = arith.cmpi eq, %101, %106 : vector<2x128xi32>
      %cst_49 = arith.constant 0.000000e+00 : f32
      %108 = vector.shape_cast %100 : vector<2x1xf32> to vector<2x1xf32>
      %109 = vector.broadcast %108 : vector<2x1xf32> to vector<2x128xf32>
      %110 = vector.broadcast %cst_49 : f32 to vector<2x128xf32>
      %111 = arith.select %107, %109, %110 : vector<2x128xi1>, vector<2x128xf32>
      %112 = vector.shape_cast %97 : vector<2x1xf32> to vector<2x1xf32>
      %113 = vector.broadcast %112 : vector<2x1xf32> to vector<2x128xf32>
      %114 = arith.select %105, %113, %111 : vector<2x128xi1>, vector<2x128xf32>
      %115 = vector.shape_cast %94 : vector<2x1xf32> to vector<2x1xf32>
      %116 = vector.broadcast %115 : vector<2x1xf32> to vector<2x128xf32>
      %117 = arith.select %103, %116, %114 : vector<2x128xi1>, vector<2x128xf32>
      %c0_50 = arith.constant 0 : index
      %c0_51 = arith.constant 0 : index
      %118 = vector.load %arg4[%c0_50, %c0_51] : memref<2x128xf32, #tpu.memory_space<vmem>>, vector<2x128xf32>
      tpu.vector_store %arg4[%c0_50, %c0_51], %117 {strides = array<i32>} : memref<2x128xf32, #tpu.memory_space<vmem>>, vector<2x128xf32>,
    } else {
    }
    return
  }
  func.func @transform_0(%arg0: i32, %arg1: i32) -> (i32, i32) {
    %c0_i32 = arith.constant 0 : i32
    return %arg0, %arg1 : i32, i32
  }
  func.func @transform_1(%arg0: i32, %arg1: i32) -> (i32, i32) {
    %c0_i32 = arith.constant 0 : i32
    return %arg0, %arg1 : i32, i32
  }
  func.func @transform_2(%arg0: i32, %arg1: i32) -> (i32, i32) {
    %c0_i32 = arith.constant 0 : i32
    %c0_i32_0 = arith.constant 0 : i32
    return %arg0, %c0_i32 : i32, i32
  }
}

</mosaic_0001>

<llo_original>
// kernel: scaled_dice_loss.1
$region0: #{scaled_dice_loss.1}
  #allocation0 [shape = 'u32[]', space=smem, size = 0x4, offset = 0x4, fixed_abs, tag = 'smem constant byte address 0x4 - core index']
  #allocation1 [shape = 'u32[144,128]{1,0:T(1,128)}', space=vmem, size = 0x12000, scoped, tag = 'internal scratch']
  #allocation2 [shape = 'f32[2,128]{1,0:T(2,128)}', space=vmem, size = 0x400, scoped, tag = 'scratch operand']
  #allocation3 [shape = 'f32[2,128]{1,0:T(2,128)}', space=vmem, size = 0x400, scoped, tag = 'scratch operand']
  #allocation4 [shape = 'f32[2,128]{1,0:T(2,128)}', space=vmem, size = 0x400, scoped, tag = 'scratch operand']
  %s0 = inlined_call_operand.vmem [shape: f32[2,1024], index: 0, kind: input, shape index: {}]
  %s1 = inlined_call_operand.vmem [shape: f32[2,1024], index: 1, kind: input, shape index: {}]
  %s2 = inlined_call_operand.vmem [shape: f32[2,128], index: 2, kind: output, shape index: {}]
  %s3 = sld [smem:[#allocation0]]
  $region26: #{scaled_dice_loss.1} parent=0
    _
  %s5 = ssub.s32 1, %s3
  %s6 = scalar_select 0, %s5, %s3
  // Predicated region
  $region2: #{scaled_dice_loss.1} parent=0 // pred_check
    _
  $region3: #{scaled_dice_loss.1} parent=0 // pred_check_branch
    %8 = sbr.rel (0) target = $region5
  $region4: #{scaled_dice_loss.1} parent=0 // pred_region
    _
  $region5: #{scaled_dice_loss.1} parent=0 // pred_fallthru
    _
  // Predicated region
  $region6: #{scaled_dice_loss.1} parent=0 // pred_check
    _
  $region7: #{scaled_dice_loss.1} parent=0 // pred_check_branch
    %10 = sbr.rel (0) target = $region9
  $region8: #{scaled_dice_loss.1} parent=0 // pred_region
    _
  $region9: #{scaled_dice_loss.1} parent=0 // pred_fallthru
    _
  %p11 = scmp.eq.s32.totalorder 0, 0
  // Predicated region
  $region10: #{scaled_dice_loss.1} parent=0 // pred_check
    %p12 = pneg %p11
  $region11: #{scaled_dice_loss.1} parent=0 // pred_check_branch
    %14 = sbr.rel (%p12) target = $region13
  $region12: #{scaled_dice_loss.1} parent=0 // pred_region
    %15 = vst [vmem:[#allocation2] sm:$0x3] 0.0
    %16 = vst [vmem:[#allocation3] sm:$0x3] 0.0
    %17 = vst [vmem:[#allocation4] sm:$0x3] 0.0
  $region13: #{scaled_dice_loss.1} parent=0 // pred_fallthru
    _
  %v18 = vld [vmem:[#allocation2] sm:$0x3]
  %v19 = vld [vmem:[#allocation3] sm:$0x3]
  %v20 = vld [vmem:[#allocation4] sm:$0x3]
  %v21 = vld [vmem:[%s0] sm:$0x3]
  %v22 = vld [vmem:[%s1] sm:$0x3]
  %v23 = vadd.f32 %v18, %v21
  %v24 = vadd.f32 %v19, %v22
  %v25 = vmul.f32 %v21, %v22
  %v26 = vadd.f32 %v20, %v25
  %s27 = scalar_lea.vmem %s0, 2
  %v28 = vld [vmem:[%s27] sm:$0x3]
  %s29 = scalar_lea.vmem %s1, 2
  %v30 = vld [vmem:[%s29] sm:$0x3]
  %v31 = vadd.f32 %v23, %v28
  %v32 = vadd.f32 %v24, %v30
  %v33 = vmul.f32 %v28, %v30
  %v34 = vadd.f32 %v26, %v33
  %s35 = scalar_lea.vmem %s0, 4
  %v36 = vld [vmem:[%s35] sm:$0x3]
  %s37 = scalar_lea.vmem %s1, 4
  %v38 = vld [vmem:[%s37] sm:$0x3]
  %v39 = vadd.f32 %v31, %v36
  %v40 = vadd.f32 %v32, %v38
  %v41 = vmul.f32 %v36, %v38
  %v42 = vadd.f32 %v34, %v41
  %s43 = scalar_lea.vmem %s0, 6
  %v44 = vld [vmem:[%s43] sm:$0x3]
  %s45 = scalar_lea.vmem %s1, 6
  %v46 = vld [vmem:[%s45] sm:$0x3]
  %v47 = vadd.f32 %v39, %v44
  %v48 = vadd.f32 %v40, %v46
  %v49 = vmul.f32 %v44, %v46
  %v50 = vadd.f32 %v42, %v49
  %s51 = scalar_lea.vmem %s0, 8
  %v52 = vld [vmem:[%s51] sm:$0x3]
  %s53 = scalar_lea.vmem %s1, 8
  %v54 = vld [vmem:[%s53] sm:$0x3]
  %v55 = vadd.f32 %v47, %v52
  %v56 = vadd.f32 %v48, %v54
  %v57 = vmul.f32 %v52, %v54
  %v58 = vadd.f32 %v50, %v57
  %s59 = scalar_lea.vmem %s0, 10
  %v60 = vld [vmem:[%s59] sm:$0x3]
  %s61 = scalar_lea.vmem %s1, 10
  %v62 = vld [vmem:[%s61] sm:$0x3]
  %v63 = vadd.f32 %v55, %v60
  %v64 = vadd.f32 %v56, %v62
  %v65 = vmul.f32 %v60, %v62
  %v66 = vadd.f32 %v58, %v65
  %s67 = scalar_lea.vmem %s0, 12
  %v68 = vld [vmem:[%s67] sm:$0x3]
  %s69 = scalar_lea.vmem %s1, 12
  %v70 = vld [vmem:[%s69] sm:$0x3]
  %v71 = vadd.f32 %v63, %v68
  %v72 = vadd.f32 %v64, %v70
  %v73 = vmul.f32 %v68, %v70
  %v74 = vadd.f32 %v66, %v73
  %s75 = scalar_lea.vmem %s0, 14
  %v76 = vld [vmem:[%s75] sm:$0x3]
  %s77 = scalar_lea.vmem %s1, 14
  %v78 = vld [vmem:[%s77] sm:$0x3]
  %v79 = vadd.f32 %v71, %v76
  %v80 = vadd.f32 %v72, %v78
  %v81 = vmul.f32 %v76, %v78
  %v82 = vadd.f32 %v74, %v81
  %83 = vst [vmem:[#allocation2] sm:$0x3] %v79
  %84 = vst [vmem:[#allocation3] sm:$0x3] %v80
  %85 = vst [vmem:[#allocation4] sm:$0x3] %v82
  // Predicated region
  $region14: #{scaled_dice_loss.1} parent=0 // pred_check
    %p86 = pneg %p11
  $region15: #{scaled_dice_loss.1} parent=0 // pred_check_branch
    %88 = sbr.rel (%p86) target = $region17
  $region16: #{scaled_dice_loss.1} parent=0 // pred_region
    %v89 = vld [vmem:[#allocation2] sm:$0x3]
    %vm90 = vcmask 1041408
    %v91 = vsel %vm90, %v89, 0.0
    %92 = vadd.xlane.f32.xlu0 %v91
    %v93 = vpop.xlane.xlu0 %92
    %v94 = vld [vmem:[#allocation3] sm:$0x3]
    %v95 = vsel %vm90, %v94, 0.0
    %96 = vadd.xlane.f32.xlu0 %v95
    %v97 = vpop.xlane.xlu0 %96
    %v98 = vld [vmem:[#allocation4] sm:$0x3]
    %v99 = vsel %vm90, %v98, 0.0
    %100 = vadd.xlane.f32.xlu0 %v99
    %v101 = vpop.xlane.xlu0 %100
    %v102 = vlaneseq
    %v103 = vand.u32 %v102, 127
    %vm104 = vcmp.eq.s32.totalorder %v103, 0
    %vm105 = vcmp.eq.s32.totalorder %v103, 1
    %vm106 = vcmp.eq.s32.totalorder %v103, 2
    %v107 = vsel %vm106, %v101, 0.0
    %v108 = vsel %vm105, %v97, %v107
    %v109 = vsel %vm104, %v93, %v108
    %110 = vst [vmem:[%s2] sm:$0x3] %v109
  $region17: #{scaled_dice_loss.1} parent=0 // pred_fallthru
    _
  // Predicated region
  $region18: #{scaled_dice_loss.1} parent=0 // pred_check
    _
  $region19: #{scaled_dice_loss.1} parent=0 // pred_check_branch
    %112 = sbr.rel (0) target = $region21
  $region20: #{scaled_dice_loss.1} parent=0 // pred_region
    _
  $region21: #{scaled_dice_loss.1} parent=0 // pred_fallthru
    _
  // Predicated region
  $region22: #{scaled_dice_loss.1} parent=0 // pred_check
    _
  $region23: #{scaled_dice_loss.1} parent=0 // pred_check_branch
    %114 = sbr.rel (0) target = $region25
  $region24: #{scaled_dice_loss.1} parent=0 // pred_region
    _
  $region25: #{scaled_dice_loss.1} parent=0 // pred_fallthru
    _

</llo_original>
